<compile_context>
chip_gen: v5e
topology: v5e:2x2
jax: 0.10.0
libtpu: 0.0.40
codegen_flags: <defaults>
</compile_context>

<pallas_src>
import jax
import jax.numpy as jnp
from jax import lax
from jax.experimental import pallas as pl
from jax.experimental.pallas import tpu as pltpu

BN_EPS = 1e-5


# ---------------------------------------------------------------------------
# Fused kernel: 4 x (Linear -> BN(train) -> ReLU) -> Linear(N-tiled) -> Sigmoid
# ---------------------------------------------------------------------------
def _generator_fused_kernel(
    x_ref,
    w1_ref, p1_ref,
    w2_ref, p2_ref,
    w3_ref, p3_ref,
    w4_ref, p4_ref,
    w5_ref, b5_ref,
    o_ref,
    h_scratch,
):
    # Grid axis tiles only the output columns of the final Linear.  The small
    # hidden stack is computed once (j == 0) into a persistent VMEM scratch and
    # reused for every subsequent output tile.
    @pl.when(pl.program_id(0) == 0)
    def _():
        h = x_ref[...].astype(jnp.float32)

        # Static (trace-time) unroll over the 4 generator blocks; activations
        # stay in vregs -- no HBM round-trips between layers.
        for w_ref, p_ref in (
            (w1_ref, p1_ref),
            (w2_ref, p2_ref),
            (w3_ref, p3_ref),
            (w4_ref, p4_ref),
        ):
            w = w_ref[...]                     # bf16 weights -> MXU-native path
            p = p_ref[...]                     # (2, N) f32: rows = gamma, beta
            gamma = p[0:1, :]
            beta = p[1:2, :]

            # Linear.  Bias omitted: it cancels exactly under training-mode BN.
            y = jnp.dot(h.astype(jnp.bfloat16), w,
                        preferred_element_type=jnp.float32)

            # BatchNorm1d (training mode): biased batch statistics over batch
            # axis; centered-square form avoids E[y^2]-E[y]^2 cancellation.
            mean = jnp.mean(y, axis=0, keepdims=True)
            centered = y - mean
            var = jnp.mean(centered * centered, axis=0, keepdims=True)
            scale = lax.rsqrt(var + BN_EPS) * gamma      # fold on the (1, N) row
            h = jnp.maximum(centered * scale + beta, 0.0)  # ReLU

        h_scratch[...] = h.astype(jnp.bfloat16)

    # Final Linear tile -> Sigmoid (exp + approx reciprocal ride the EUP slot).
    y = jnp.dot(h_scratch[...], w5_ref[...],
                preferred_element_type=jnp.float32) + b5_ref[...]
    o_ref[...] = pl.reciprocal(1.0 + jnp.exp(-y), approx=True)


# ---------------------------------------------------------------------------
# Wrapper
# ---------------------------------------------------------------------------
def generator_forward(noise, params, *, tile_n=2048):
    """params = [(w1, gb1), (w2, gb2), (w3, gb3), (w4, gb4), (w5, b5)].

    w*: bf16 (in, out); gb*: f32 (2, out) rows = gamma, beta; b5: f32 (1, out).
    """
    (w1, p1), (w2, p2), (w3, p3), (w4, p4), (w5, b5) = params
    M = noise.shape[0]
    H4, N_out = w5.shape

    tn = min(tile_n, N_out)
    assert N_out % tn == 0, "final output width must be divisible by the N tile"
    grid = (N_out // tn,)

    def full_block(a):
        # Whole-array block, resident in VMEM for every grid step.
        return pl.BlockSpec(a.shape, lambda j: (0, 0))

    in_specs = [
        full_block(noise),
        full_block(w1), full_block(p1),
        full_block(w2), full_block(p2),
        full_block(w3), full_block(p3),
        full_block(w4), full_block(p4),
        pl.BlockSpec((H4, tn), lambda j: (0, j)),   # w5: N-tiled
        pl.BlockSpec((1, tn), lambda j: (0, j)),    # b5: N-tiled
    ]
    out_spec = pl.BlockSpec((M, tn), lambda j: (0, j))

    return pl.pallas_call(
        _generator_fused_kernel,
        out_shape=jax.ShapeDtypeStruct((M, N_out), jnp.float32),
        grid=grid,
        in_specs=in_specs,
        out_specs=out_spec,
        scratch_shapes=[pltpu.VMEM((M, H4), jnp.bfloat16)],
        compiler_params=pltpu.CompilerParams(
            # "arbitrary": the hidden-stack scratch is written at j==0 and reused
            # by later steps, so the axis must run sequentially on one core.
            # TODO(synk): on v7x, make this axis "parallel" (2 TCs) by
            # recomputing the small hidden stack per core instead of the j==0
            # scratch init.
            dimension_semantics=("arbitrary",),
        ),
    )(noise, w1, p1, w2, p2, w3, p3, w4, p4, w5, b5)


# ---------------------------------------------------------------------------
# Parameter construction (deterministic, mimics nn.Linear / nn.BatchNorm1d init)
# ---------------------------------------------------------------------------
def init_generator_params(key, z_dim, im_dim, hidden_dim):
    dims = [z_dim, hidden_dim, hidden_dim * 2, hidden_dim * 4, hidden_dim * 8, im_dim]
    params = []
    for i in range(len(dims) - 1):
        in_d, out_d = dims[i], dims[i + 1]
        key, kw, kb = jax.random.split(key, 3)
        bound = 1.0 / jnp.sqrt(jnp.float32(in_d))
        w = jax.random.uniform(kw, (in_d, out_d), jnp.float32, -bound, bound)
        w = w.astype(jnp.bfloat16)            # MXU-native weight dtype
        if i < len(dims) - 2:
            # Linear bias dropped: redundant under training-mode BatchNorm.
            gamma = jnp.ones((1, out_d), jnp.float32)
            beta = jnp.zeros((1, out_d), jnp.float32)
            params.append((w, jnp.concatenate([gamma, beta], axis=0)))  # (2, out)
        else:
            b = jax.random.uniform(kb, (1, out_d), jnp.float32, -bound, bound)
            params.append((w, b))
    return params


# Pure-JAX reference (same bf16-weight matmul semantics) for a sanity check.
def generator_forward_ref(noise, params):
    h = noise.astype(jnp.float32)
    for w, gb in params[:-1]:
        gamma, beta = gb[0:1, :], gb[1:2, :]
        y = jnp.dot(h.astype(jnp.bfloat16), w, preferred_element_type=jnp.float32)
        mean = jnp.mean(y, axis=0, keepdims=True)
        centered = y - mean
        var = jnp.mean(centered * centered, axis=0, keepdims=True)
        h = jnp.maximum(centered * (gamma / jnp.sqrt(var + BN_EPS)) + beta, 0.0)
    w5, b5 = params[-1]
    y = jnp.dot(h.astype(jnp.bfloat16), w5, preferred_element_type=jnp.float32) + b5
    return 1.0 / (1.0 + jnp.exp(-y))


# ---------------------------------------------------------------------------
if __name__ == "__main__":
    # Small, module-consistent shapes: noise is (batch, z_dim).
    batch = 8
    z_dim = 16
    hidden_dim = 32
    im_dim = 4 * 8 * 8  # 256 (scaled-down analogue of 4*96*96)

    key = jax.random.PRNGKey(0)
    k_noise, k_params = jax.random.split(key)
    noise = jax.random.normal(k_noise, (batch, z_dim), jnp.float32)
    params = init_generator_params(k_params, z_dim, im_dim, hidden_dim)

    out = generator_forward(noise, params)
    out = jax.block_until_ready(out)

    ref = generator_forward_ref(noise, params)
    assert out.shape == (batch, im_dim), out.shape
    err = float(jnp.abs(out - ref).max())
    assert jnp.allclose(out, ref, atol=5e-3, rtol=5e-3), err

    print("KERNEL_OK")
</pallas_src>

<mosaic_0001>
module attributes {stable_mosaic.version = 11 : i64} {
  func.func @_generator_fused_kernel(%arg0: i32, %arg1: memref<8x16xf32, #tpu.memory_space<vmem>>, %arg2: memref<16x32xbf16, #tpu.memory_space<vmem>>, %arg3: memref<2x32xf32, #tpu.memory_space<vmem>>, %arg4: memref<32x64xbf16, #tpu.memory_space<vmem>>, %arg5: memref<2x64xf32, #tpu.memory_space<vmem>>, %arg6: memref<64x128xbf16, #tpu.memory_space<vmem>>, %arg7: memref<2x128xf32, #tpu.memory_space<vmem>>, %arg8: memref<128x256xbf16, #tpu.memory_space<vmem>>, %arg9: memref<2x256xf32, #tpu.memory_space<vmem>>, %arg10: memref<256x256xbf16, #tpu.memory_space<vmem>>, %arg11: memref<1x256xf32, #tpu.memory_space<vmem>>, %arg12: memref<8x256xf32, #tpu.memory_space<vmem>>, %arg13: memref<8x256xbf16, #tpu.memory_space<vmem>>) attributes {dimension_semantics = [#tpu.dimension_semantics<arbitrary>], iteration_bounds = array<i64: 1>, scalar_prefetch = 0 : i64, scratch_operands = 1 : i64, tpu.core_type = #tpu.core_type<tc>, window_params = [{pipeline_mode = #tpu.pipeline_mode<synchronous>, transform_indices = @transform_0, window_bounds = array<i64: 8, 16>}, {pipeline_mode = #tpu.pipeline_mode<synchronous>, transform_indices = @transform_1, window_bounds = array<i64: 16, 32>}, {pipeline_mode = #tpu.pipeline_mode<synchronous>, transform_indices = @transform_2, window_bounds = array<i64: 2, 32>}, {pipeline_mode = #tpu.pipeline_mode<synchronous>, transform_indices = @transform_3, window_bounds = array<i64: 32, 64>}, {pipeline_mode = #tpu.pipeline_mode<synchronous>, transform_indices = @transform_4, window_bounds = array<i64: 2, 64>}, {pipeline_mode = #tpu.pipeline_mode<synchronous>, transform_indices = @transform_5, window_bounds = array<i64: 64, 128>}, {pipeline_mode = #tpu.pipeline_mode<synchronous>, transform_indices = @transform_6, window_bounds = array<i64: 2, 128>}, {pipeline_mode = #tpu.pipeline_mode<synchronous>, transform_indices = @transform_7, window_bounds = array<i64: 128, 256>}, {pipeline_mode = #tpu.pipeline_mode<synchronous>, transform_indices = @transform_8, window_bounds = array<i64: 2, 256>}, {transform_indices = @transform_9, window_bounds = array<i64: 256, 256>}, {transform_indices = @transform_10, window_bounds = array<i64: 1, 256>}, {transform_indices = @transform_11, window_bounds = array<i64: 8, 256>}]} {
    %c0_i32 = arith.constant 0 : i32
    %0 = arith.cmpi eq, %arg0, %c0_i32 : i32
    %1 = arith.extui %0 : i1 to i32
    %c0_i32_0 = arith.constant 0 : i32
    %2 = arith.cmpi ne, %1, %c0_i32_0 : i32
    scf.if %2 {
      %c0_10 = arith.constant 0 : index
      %c0_11 = arith.constant 0 : index
      %16 = vector.load %arg1[%c0_10, %c0_11] : memref<8x16xf32, #tpu.memory_space<vmem>>, vector<8x16xf32>
      %c0_12 = arith.constant 0 : index
      %c0_13 = arith.constant 0 : index
      %17 = vector.load %arg2[%c0_12, %c0_13] : memref<16x32xbf16, #tpu.memory_space<vmem>>, vector<16x32xbf16>
      %c0_14 = arith.constant 0 : index
      %c0_15 = arith.constant 0 : index
      %18 = vector.load %arg3[%c0_14, %c0_15] : memref<2x32xf32, #tpu.memory_space<vmem>>, vector<2x32xf32>
      %19 = vector.extract_strided_slice %18 {offsets = [0, 0], sizes = [1, 32], strides = [1, 1]} : vector<2x32xf32> to vector<1x32xf32>
      %20 = vector.extract_strided_slice %18 {offsets = [1, 0], sizes = [1, 32], strides = [1, 1]} : vector<2x32xf32> to vector<1x32xf32>
      %21 = arith.truncf %16 : vector<8x16xf32> to vector<8x16xbf16>
      %cst_16 = arith.constant dense<0.000000e+00> : vector<8x32xf32>
      %22 = tpu.matmul %21, %17, %cst_16 {dimension_numbers = #tpu.dot_dimension_numbers<[1], [0], [0], [1], [0, 0, 1, 1], [], []>} : vector<8x16xbf16>, vector<16x32xbf16>, vector<8x32xf32> -> vector<8x32xf32>
      %cst_17 = arith.constant dense<0.000000e+00> : vector<32xf32>
      %23 = vector.multi_reduction <add>, %22, %cst_17 [0] : vector<8x32xf32> to vector<32xf32>
      %24 = vector.shape_cast %23 : vector<32xf32> to vector<1x32xf32>
      %cst_18 = arith.constant 8.000000e+00 : f32
      %25 = vector.broadcast %cst_18 : f32 to vector<1x32xf32>
      %26 = arith.divf %24, %25 : vector<1x32xf32>
      %27 = vector.broadcast %26 : vector<1x32xf32> to vector<8x32xf32>
      %28 = arith.subf %22, %27 : vector<8x32xf32>
      %29 = arith.mulf %28, %28 : vector<8x32xf32>
      %cst_19 = arith.constant dense<0.000000e+00> : vector<32xf32>
      %30 = vector.multi_reduction <add>, %29, %cst_19 [0] : vector<8x32xf32> to vector<32xf32>
      %31 = vector.shape_cast %30 : vector<32xf32> to vector<1x32xf32>
      %cst_20 = arith.constant 8.000000e+00 : f32
      %32 = vector.broadcast %cst_20 : f32 to vector<1x32xf32>
      %33 = arith.divf %31, %32 : vector<1x32xf32>
      %cst_21 = arith.constant 9.99999974E-6 : f32
      %34 = vector.broadcast %cst_21 : f32 to vector<1x32xf32>
      %35 = arith.addf %33, %34 : vector<1x32xf32>
      %36 = math.rsqrt %35 : vector<1x32xf32>
      %37 = arith.mulf %36, %19 : vector<1x32xf32>
      %38 = vector.broadcast %37 : vector<1x32xf32> to vector<8x32xf32>
      %39 = arith.mulf %28, %38 : vector<8x32xf32>
      %40 = vector.broadcast %20 : vector<1x32xf32> to vector<8x32xf32>
      %41 = arith.addf %39, %40 : vector<8x32xf32>
      %cst_22 = arith.constant 0.000000e+00 : f32
      %42 = vector.broadcast %cst_22 : f32 to vector<8x32xf32>
      %43 = arith.maximumf %41, %42 : vector<8x32xf32>
      %c0_23 = arith.constant 0 : index
      %c0_24 = arith.constant 0 : index
      %44 = vector.load %arg4[%c0_23, %c0_24] : memref<32x64xbf16, #tpu.memory_space<vmem>>, vector<32x64xbf16>
      %c0_25 = arith.constant 0 : index
      %c0_26 = arith.constant 0 : index
      %45 = vector.load %arg5[%c0_25, %c0_26] : memref<2x64xf32, #tpu.memory_space<vmem>>, vector<2x64xf32>
      %46 = vector.extract_strided_slice %45 {offsets = [0, 0], sizes = [1, 64], strides = [1, 1]} : vector<2x64xf32> to vector<1x64xf32>
      %47 = vector.extract_strided_slice %45 {offsets = [1, 0], sizes = [1, 64], strides = [1, 1]} : vector<2x64xf32> to vector<1x64xf32>
      %48 = arith.truncf %43 : vector<8x32xf32> to vector<8x32xbf16>
      %cst_27 = arith.constant dense<0.000000e+00> : vector<8x64xf32>
      %49 = tpu.matmul %48, %44, %cst_27 {dimension_numbers = #tpu.dot_dimension_numbers<[1], [0], [0], [1], [0, 0, 1, 1], [], []>} : vector<8x32xbf16>, vector<32x64xbf16>, vector<8x64xf32> -> vector<8x64xf32>
      %cst_28 = arith.constant dense<0.000000e+00> : vector<64xf32>
      %50 = vector.multi_reduction <add>, %49, %cst_28 [0] : vector<8x64xf32> to vector<64xf32>
      %51 = vector.shape_cast %50 : vector<64xf32> to vector<1x64xf32>
      %cst_29 = arith.constant 8.000000e+00 : f32
      %52 = vector.broadcast %cst_29 : f32 to vector<1x64xf32>
      %53 = arith.divf %51, %52 : vector<1x64xf32>
      %54 = vector.broadcast %53 : vector<1x64xf32> to vector<8x64xf32>
      %55 = arith.subf %49, %54 : vector<8x64xf32>
      %56 = arith.mulf %55, %55 : vector<8x64xf32>
      %cst_30 = arith.constant dense<0.000000e+00> : vector<64xf32>
      %57 = vector.multi_reduction <add>, %56, %cst_30 [0] : vector<8x64xf32> to vector<64xf32>
      %58 = vector.shape_cast %57 : vector<64xf32> to vector<1x64xf32>
      %cst_31 = arith.constant 8.000000e+00 : f32
      %59 = vector.broadcast %cst_31 : f32 to vector<1x64xf32>
      %60 = arith.divf %58, %59 : vector<1x64xf32>
      %cst_32 = arith.constant 9.99999974E-6 : f32
      %61 = vector.broadcast %cst_32 : f32 to vector<1x64xf32>
      %62 = arith.addf %60, %61 : vector<1x64xf32>
      %63 = math.rsqrt %62 : vector<1x64xf32>
      %64 = arith.mulf %63, %46 : vector<1x64xf32>
      %65 = vector.broadcast %64 : vector<1x64xf32> to vector<8x64xf32>
      %66 = arith.mulf %55, %65 : vector<8x64xf32>
      %67 = vector.broadcast %47 : vector<1x64xf32> to vector<8x64xf32>
      %68 = arith.addf %66, %67 : vector<8x64xf32>
      %cst_33 = arith.constant 0.000000e+00 : f32
      %69 = vector.broadcast %cst_33 : f32 to vector<8x64xf32>
      %70 = arith.maximumf %68, %69 : vector<8x64xf32>
      %c0_34 = arith.constant 0 : index
      %c0_35 = arith.constant 0 : index
      %71 = vector.load %arg6[%c0_34, %c0_35] : memref<64x128xbf16, #tpu.memory_space<vmem>>, vector<64x128xbf16>
      %c0_36 = arith.constant 0 : index
      %c0_37 = arith.constant 0 : index
      %72 = vector.load %arg7[%c0_36, %c0_37] : memref<2x128xf32, #tpu.memory_space<vmem>>, vector<2x128xf32>
      %73 = vector.extract_strided_slice %72 {offsets = [0, 0], sizes = [1, 128], strides = [1, 1]} : vector<2x128xf32> to vector<1x128xf32>
      %74 = vector.extract_strided_slice %72 {offsets = [1, 0], sizes = [1, 128], strides = [1, 1]} : vector<2x128xf32> to vector<1x128xf32>
      %75 = arith.truncf %70 : vector<8x64xf32> to vector<8x64xbf16>
      %cst_38 = arith.constant dense<0.000000e+00> : vector<8x128xf32>
      %76 = tpu.matmul %75, %71, %cst_38 {dimension_numbers = #tpu.dot_dimension_numbers<[1], [0], [0], [1], [0, 0, 1, 1], [], []>} : vector<8x64xbf16>, vector<64x128xbf16>, vector<8x128xf32> -> vector<8x128xf32>
      %cst_39 = arith.constant dense<0.000000e+00> : vector<128xf32>
      %77 = vector.multi_reduction <add>, %76, %cst_39 [0] : vector<8x128xf32> to vector<128xf32>
      %78 = vector.shape_cast %77 : vector<128xf32> to vector<1x128xf32>
      %cst_40 = arith.constant 8.000000e+00 : f32
      %79 = vector.broadcast %cst_40 : f32 to vector<1x128xf32>
      %80 = arith.divf %78, %79 : vector<1x128xf32>
      %81 = vector.broadcast %80 : vector<1x128xf32> to vector<8x128xf32>
      %82 = arith.subf %76, %81 : vector<8x128xf32>
      %83 = arith.mulf %82, %82 : vector<8x128xf32>
      %cst_41 = arith.constant dense<0.000000e+00> : vector<128xf32>
      %84 = vector.multi_reduction <add>, %83, %cst_41 [0] : vector<8x128xf32> to vector<128xf32>
      %85 = vector.shape_cast %84 : vector<128xf32> to vector<1x128xf32>
      %cst_42 = arith.constant 8.000000e+00 : f32
      %86 = vector.broadcast %cst_42 : f32 to vector<1x128xf32>
      %87 = arith.divf %85, %86 : vector<1x128xf32>
      %cst_43 = arith.constant 9.99999974E-6 : f32
      %88 = vector.broadcast %cst_43 : f32 to vector<1x128xf32>
      %89 = arith.addf %87, %88 : vector<1x128xf32>
      %90 = math.rsqrt %89 : vector<1x128xf32>
      %91 = arith.mulf %90, %73 : vector<1x128xf32>
      %92 = vector.broadcast %91 : vector<1x128xf32> to vector<8x128xf32>
      %93 = arith.mulf %82, %92 : vector<8x128xf32>
      %94 = vector.broadcast %74 : vector<1x128xf32> to vector<8x128xf32>
      %95 = arith.addf %93, %94 : vector<8x128xf32>
      %cst_44 = arith.constant 0.000000e+00 : f32
      %96 = vector.broadcast %cst_44 : f32 to vector<8x128xf32>
      %97 = arith.maximumf %95, %96 : vector<8x128xf32>
      %c0_45 = arith.constant 0 : index
      %c0_46 = arith.constant 0 : index
      %98 = vector.load %arg8[%c0_45, %c0_46] : memref<128x256xbf16, #tpu.memory_space<vmem>>, vector<128x256xbf16>
      %c0_47 = arith.constant 0 : index
      %c0_48 = arith.constant 0 : index
      %99 = vector.load %arg9[%c0_47, %c0_48] : memref<2x256xf32, #tpu.memory_space<vmem>>, vector<2x256xf32>
      %100 = vector.extract_strided_slice %99 {offsets = [0, 0], sizes = [1, 256], strides = [1, 1]} : vector<2x256xf32> to vector<1x256xf32>
      %101 = vector.extract_strided_slice %99 {offsets = [1, 0], sizes = [1, 256], strides = [1, 1]} : vector<2x256xf32> to vector<1x256xf32>
      %102 = arith.truncf %97 : vector<8x128xf32> to vector<8x128xbf16>
      %cst_49 = arith.constant dense<0.000000e+00> : vector<8x256xf32>
      %103 = tpu.matmul %102, %98, %cst_49 {dimension_numbers = #tpu.dot_dimension_numbers<[1], [0], [0], [1], [0, 0, 1, 1], [], []>} : vector<8x128xbf16>, vector<128x256xbf16>, vector<8x256xf32> -> vector<8x256xf32>
      %cst_50 = arith.constant dense<0.000000e+00> : vector<256xf32>
      %104 = vector.multi_reduction <add>, %103, %cst_50 [0] : vector<8x256xf32> to vector<256xf32>
      %105 = vector.shape_cast %104 : vector<256xf32> to vector<1x256xf32>
      %cst_51 = arith.constant 8.000000e+00 : f32
      %106 = vector.broadcast %cst_51 : f32 to vector<1x256xf32>
      %107 = arith.divf %105, %106 : vector<1x256xf32>
      %108 = vector.broadcast %107 : vector<1x256xf32> to vector<8x256xf32>
      %109 = arith.subf %103, %108 : vector<8x256xf32>
      %110 = arith.mulf %109, %109 : vector<8x256xf32>
      %cst_52 = arith.constant dense<0.000000e+00> : vector<256xf32>
      %111 = vector.multi_reduction <add>, %110, %cst_52 [0] : vector<8x256xf32> to vector<256xf32>
      %112 = vector.shape_cast %111 : vector<256xf32> to vector<1x256xf32>
      %cst_53 = arith.constant 8.000000e+00 : f32
      %113 = vector.broadcast %cst_53 : f32 to vector<1x256xf32>
      %114 = arith.divf %112, %113 : vector<1x256xf32>
      %cst_54 = arith.constant 9.99999974E-6 : f32
      %115 = vector.broadcast %cst_54 : f32 to vector<1x256xf32>
      %116 = arith.addf %114, %115 : vector<1x256xf32>
      %117 = math.rsqrt %116 : vector<1x256xf32>
      %118 = arith.mulf %117, %100 : vector<1x256xf32>
      %119 = vector.broadcast %118 : vector<1x256xf32> to vector<8x256xf32>
      %120 = arith.mulf %109, %119 : vector<8x256xf32>
      %121 = vector.broadcast %101 : vector<1x256xf32> to vector<8x256xf32>
      %122 = arith.addf %120, %121 : vector<8x256xf32>
      %cst_55 = arith.constant 0.000000e+00 : f32
      %123 = vector.broadcast %cst_55 : f32 to vector<8x256xf32>
      %124 = arith.maximumf %122, %123 : vector<8x256xf32>
      %125 = arith.truncf %124 : vector<8x256xf32> to vector<8x256xbf16>
      %c0_56 = arith.constant 0 : index
      %c0_57 = arith.constant 0 : index
      %126 = vector.load %arg13[%c0_56, %c0_57] : memref<8x256xbf16, #tpu.memory_space<vmem>>, vector<8x256xbf16>
      tpu.vector_store %arg13[%c0_56, %c0_57], %125 {strides = array<i32>} : memref<8x256xbf16, #tpu.memory_space<vmem>>, vector<8x256xbf16>,
    } else {
    }
    %c0 = arith.constant 0 : index
    %c0_1 = arith.constant 0 : index
    %3 = vector.load %arg13[%c0, %c0_1] : memref<8x256xbf16, #tpu.memory_space<vmem>>, vector<8x256xbf16>
    %c0_2 = arith.constant 0 : index
    %c0_3 = arith.constant 0 : index
    %4 = vector.load %arg10[%c0_2, %c0_3] : memref<256x256xbf16, #tpu.memory_space<vmem>>, vector<256x256xbf16>
    %cst = arith.constant dense<0.000000e+00> : vector<8x256xf32>
    %5 = tpu.matmul %3, %4, %cst {dimension_numbers = #tpu.dot_dimension_numbers<[1], [0], [0], [1], [0, 0, 1, 1], [], []>} : vector<8x256xbf16>, vector<256x256xbf16>, vector<8x256xf32> -> vector<8x256xf32>
    %c0_4 = arith.constant 0 : index
    %c0_5 = arith.constant 0 : index
    %6 = vector.load %arg11[%c0_4, %c0_5] : memref<1x256xf32, #tpu.memory_space<vmem>>, vector<1x256xf32>
    %7 = vector.broadcast %6 : vector<1x256xf32> to vector<8x256xf32>
    %8 = arith.addf %5, %7 : vector<8x256xf32>
    %cst_6 = arith.constant 0.000000e+00 : f32
    %9 = vector.broadcast %cst_6 : f32 to vector<8x256xf32>
    %10 = arith.subf %9, %8 : vector<8x256xf32>
    %11 = math.exp %10 : vector<8x256xf32>
    %cst_7 = arith.constant 1.000000e+00 : f32
    %12 = vector.broadcast %cst_7 : f32 to vector<8x256xf32>
    %13 = arith.addf %12, %11 : vector<8x256xf32>
    %14 = tpu.reciprocal %13 {approx = true} : vector<8x256xf32> -> vector<8x256xf32>
    %c0_8 = arith.constant 0 : index
    %c0_9 = arith.constant 0 : index
    %15 = vector.load %arg12[%c0_8, %c0_9] : memref<8x256xf32, #tpu.memory_space<vmem>>, vector<8x256xf32>
    tpu.vector_store %arg12[%c0_8, %c0_9], %14 {strides = array<i32>} : memref<8x256xf32, #tpu.memory_space<vmem>>, vector<8x256xf32>,
    return
  }
  func.func @transform_0(%arg0: i32) -> (i32, i32) {
    %c0_i32 = arith.constant 0 : i32
    %c0_i32_0 = arith.constant 0 : i32
    %c0_i32_1 = arith.constant 0 : i32
    return %c0_i32, %c0_i32_0 : i32, i32
  }
  func.func @transform_1(%arg0: i32) -> (i32, i32) {
    %c0_i32 = arith.constant 0 : i32
    %c0_i32_0 = arith.constant 0 : i32
    %c0_i32_1 = arith.constant 0 : i32
    return %c0_i32, %c0_i32_0 : i32, i32
  }
  func.func @transform_2(%arg0: i32) -> (i32, i32) {
    %c0_i32 = arith.constant 0 : i32
    %c0_i32_0 = arith.constant 0 : i32
    %c0_i32_1 = arith.constant 0 : i32
    return %c0_i32, %c0_i32_0 : i32, i32
  }
  func.func @transform_3(%arg0: i32) -> (i32, i32) {
    %c0_i32 = arith.constant 0 : i32
    %c0_i32_0 = arith.constant 0 : i32
    %c0_i32_1 = arith.constant 0 : i32
    return %c0_i32, %c0_i32_0 : i32, i32
  }
  func.func @transform_4(%arg0: i32) -> (i32, i32) {
    %c0_i32 = arith.constant 0 : i32
    %c0_i32_0 = arith.constant 0 : i32
    %c0_i32_1 = arith.constant 0 : i32
    return %c0_i32, %c0_i32_0 : i32, i32
  }
  func.func @transform_5(%arg0: i32) -> (i32, i32) {
    %c0_i32 = arith.constant 0 : i32
    %c0_i32_0 = arith.constant 0 : i32
    %c0_i32_1 = arith.constant 0 : i32
    return %c0_i32, %c0_i32_0 : i32, i32
  }
  func.func @transform_6(%arg0: i32) -> (i32, i32) {
    %c0_i32 = arith.constant 0 : i32
    %c0_i32_0 = arith.constant 0 : i32
    %c0_i32_1 = arith.constant 0 : i32
    return %c0_i32, %c0_i32_0 : i32, i32
  }
  func.func @transform_7(%arg0: i32) -> (i32, i32) {
    %c0_i32 = arith.constant 0 : i32
    %c0_i32_0 = arith.constant 0 : i32
    %c0_i32_1 = arith.constant 0 : i32
    return %c0_i32, %c0_i32_0 : i32, i32
  }
  func.func @transform_8(%arg0: i32) -> (i32, i32) {
    %c0_i32 = arith.constant 0 : i32
    %c0_i32_0 = arith.constant 0 : i32
    %c0_i32_1 = arith.constant 0 : i32
    return %c0_i32, %c0_i32_0 : i32, i32
  }
  func.func @transform_9(%arg0: i32) -> (i32, i32) {
    %c0_i32 = arith.constant 0 : i32
    %c0_i32_0 = arith.constant 0 : i32
    return %c0_i32, %arg0 : i32, i32
  }
  func.func @transform_10(%arg0: i32) -> (i32, i32) {
    %c0_i32 = arith.constant 0 : i32
    %c0_i32_0 = arith.constant 0 : i32
    return %c0_i32, %arg0 : i32, i32
  }
  func.func @transform_11(%arg0: i32) -> (i32, i32) {
    %c0_i32 = arith.constant 0 : i32
    %c0_i32_0 = arith.constant 0 : i32
    return %c0_i32, %arg0 : i32, i32
  }
}

</mosaic_0001>

<llo_original>
// kernel: tpu_custom_call.1
$region0: #{tpu_custom_call.1}
  #allocation0 [shape = 'u32[]', space=smem, size = 0x4, offset = 0x4, fixed_abs, tag = 'smem constant byte address 0x4 - core index']
  #allocation1 [shape = 'u32[72,128]{1,0:T(1,128)}', space=vmem, size = 0x9000, scoped, tag = 'internal scratch']
  #allocation2 [shape = 'bf16[8,256]{1,0:T(8,128)(2,1)}', space=vmem, size = 0x1000, scoped, tag = 'scratch operand']
  %s0 = inlined_call_operand.hbm [shape: f32[8,16], index: 0, kind: input, shape index: {}]
  %s1 = inlined_call_operand.hbm [shape: bf16[16,32], index: 1, kind: input, shape index: {}]
  %s2 = inlined_call_operand.hbm [shape: f32[2,32], index: 2, kind: input, shape index: {}]
  %s3 = inlined_call_operand.hbm [shape: bf16[32,64], index: 3, kind: input, shape index: {}]
  %s4 = inlined_call_operand.vmem [shape: f32[2,64], index: 4, kind: input, shape index: {}]
  %s5 = inlined_call_operand.hbm [shape: bf16[64,128], index: 5, kind: input, shape index: {}]
  %s6 = inlined_call_operand.hbm [shape: f32[2,128], index: 6, kind: input, shape index: {}]
  %s7 = inlined_call_operand.hbm [shape: bf16[128,256], index: 7, kind: input, shape index: {}]
  %s8 = inlined_call_operand.vmem [shape: f32[2,256], index: 8, kind: input, shape index: {}]
  %s9 = inlined_call_operand.hbm [shape: bf16[256,256], index: 9, kind: input, shape index: {}]
  %s10 = inlined_call_operand.vmem [shape: f32[1,256], index: 10, kind: input, shape index: {}]
  %s11 = inlined_call_operand.hbm [shape: f32[8,256], index: 11, kind: output, shape index: {}]
  %s12 = sld [smem:[#allocation0]]
  $region90: #{tpu_custom_call.1} parent=0
    _
  %s14 = ssub.s32 1, %s12
  %s15 = scalar_select 0, %s14, %s12
  $region1: #{tpu_custom_call.1} parent=0
    #allocation3 [shape = 'u8[4096]{0}', space=vmem, size = 0x1000, scoped, tag = 'input window, operand 0, single buffered']
    #allocation4 [shape = 's32[1]{0}', space=sflag, size = 0x4, scoped, tag = 'scoped memory for tpu_custom_call.1']
    #allocation5 [shape = 's32[1]{0}', space=sflag, size = 0x4, scoped, tag = 'scoped memory for tpu_custom_call.1']
    #allocation6 [shape = 'u8[4096]{0}', space=vmem, size = 0x1000, scoped, tag = 'input window, operand 1, single buffered']
    #allocation7 [shape = 's32[1]{0}', space=sflag, size = 0x4, scoped, tag = 'scoped memory for tpu_custom_call.1']
    #allocation8 [shape = 'u8[1024]{0}', space=vmem, size = 0x400, scoped, tag = 'input window, operand 2, single buffered']
    #allocation9 [shape = 'u8[8192]{0}', space=vmem, size = 0x2000, scoped, tag = 'input window, operand 3, single buffered']
    #allocation10 [shape = 's32[1]{0}', space=sflag, size = 0x4, scoped, tag = 'scoped memory for tpu_custom_call.1']
    #allocation11 [shape = 'u8[16384]{0}', space=vmem, size = 0x4000, scoped, tag = 'input window, operand 5, single buffered']
    #allocation12 [shape = 'u8[1024]{0}', space=vmem, size = 0x400, scoped, tag = 'input window, operand 6, single buffered']
    #allocation13 [shape = 's32[1]{0}', space=sflag, size = 0x4, scoped, tag = 'scoped memory for tpu_custom_call.1']
    #allocation14 [shape = 'u8[65536]{0}', space=vmem, size = 0x10000, scoped, tag = 'input window, operand 7, single buffered']
    #allocation15 [shape = 'u8[131072]{0}', space=vmem, size = 0x20000, scoped, tag = 'input window, operand 9, single buffered']
    #allocation16 [shape = 's32[1]{0}', space=sflag, size = 0x4, scoped, tag = 'scoped memory for tpu_custom_call.1']
    #allocation17 [shape = 'u8[8192]{0}', space=vmem, size = 0x2000, scoped, tag = 'output window, operand 0, single buffered']
    %16 = vsyncpa [#allocation4], 0
    %17 = vsyncpa [#allocation7], 0
    %18 = vsyncpa [#allocation10], 0
    %19 = vsyncpa [#allocation13], 0
    %20 = vsyncpa [#allocation16], 0
    %21 = vsyncpa [#allocation5], 0
    // Predicated region
    $region2: #{tpu_custom_call.1} parent=1 // pred_check
      _
    $region3: #{tpu_custom_call.1} parent=1 // pred_check_branch
      %23 = sbr.rel (0) target = $region5
    $region4: #{tpu_custom_call.1} parent=1 // pred_region
      %25 = vsyncadd [#allocation4], 0
      %s27 = sshll.u32 %s0, 4
      %s28 = int_to_ptr.hbm [resolvable:$true] %s27
      %s29 = sshll.u32 [#allocation3], 4
      %s30 = int_to_ptr.vmem [resolvable:$true] %s29
      %32 = dma.hbm_to_vmem [thread:$0]  %s28, 128, %s30, [#allocation4]
    $region5: #{tpu_custom_call.1} parent=1 // pred_fallthru
      _
    // Predicated region
    $region6: #{tpu_custom_call.1} parent=1 // pred_check
      _
    $region7: #{tpu_custom_call.1} parent=1 // pred_check_branch
      %34 = sbr.rel (0) target = $region9
    $region8: #{tpu_custom_call.1} parent=1 // pred_region
      %36 = vsyncadd [#allocation7], 0
      %s37 = sshll.u32 %s1, 4
      %s38 = int_to_ptr.hbm [resolvable:$true] %s37
      %s39 = sshll.u32 [#allocation6], 4
      %s40 = int_to_ptr.vmem [resolvable:$true] %s39
      %45 = dma.hbm_to_vmem [thread:$0]  %s38, 128, %s40, [#allocation7], 64, 64, 4
    $region9: #{tpu_custom_call.1} parent=1 // pred_fallthru
      _
    // Predicated region
    $region10: #{tpu_custom_call.1} parent=1 // pred_check
      _
    $region11: #{tpu_custom_call.1} parent=1 // pred_check_branch
      %47 = sbr.rel (0) target = $region13
    $region12: #{tpu_custom_call.1} parent=1 // pred_region
      %49 = vsyncadd [#allocation7], 0
      %s51 = sshll.u32 %s2, 4
      %s52 = int_to_ptr.hbm [resolvable:$true] %s51
      %s53 = sshll.u32 [#allocation8], 4
      %s54 = int_to_ptr.vmem [resolvable:$true] %s53
      %56 = dma.hbm_to_vmem [thread:$0]  %s52, 32, %s54, [#allocation7]
    $region13: #{tpu_custom_call.1} parent=1 // pred_fallthru
      _
    // Predicated region
    $region14: #{tpu_custom_call.1} parent=1 // pred_check
      _
    $region15: #{tpu_custom_call.1} parent=1 // pred_check_branch
      %58 = sbr.rel (0) target = $region17
    $region16: #{tpu_custom_call.1} parent=1 // pred_region
      %60 = vsyncadd [#allocation10], 0
      %s61 = sshll.u32 %s3, 4
      %s62 = int_to_ptr.hbm [resolvable:$true] %s61
      %s63 = sshll.u32 [#allocation9], 4
      %s64 = int_to_ptr.vmem [resolvable:$true] %s63
      %69 = dma.hbm_to_vmem [thread:$0]  %s62, 256, %s64, [#allocation10], 64, 64, 4
    $region17: #{tpu_custom_call.1} parent=1 // pred_fallthru
      _
    // Predicated region
    $region18: #{tpu_custom_call.1} parent=1 // pred_check
      _
    $region19: #{tpu_custom_call.1} parent=1 // pred_check_branch
      %71 = sbr.rel (0) target = $region21
    $region20: #{tpu_custom_call.1} parent=1 // pred_region
      _
    $region21: #{tpu_custom_call.1} parent=1 // pred_fallthru
      _
    // Predicated region
    $region22: #{tpu_custom_call.1} parent=1 // pred_check
      _
    $region23: #{tpu_custom_call.1} parent=1 // pred_check_branch
      %73 = sbr.rel (0) target = $region25
    $region24: #{tpu_custom_call.1} parent=1 // pred_region
      %75 = vsyncadd [#allocation10], 0
      %s76 = sshll.u32 %s5, 4
      %s77 = int_to_ptr.hbm [resolvable:$true] %s76
      %s78 = sshll.u32 [#allocation11], 4
      %s79 = int_to_ptr.vmem [resolvable:$true] %s78
      %84 = dma.hbm_to_vmem [thread:$0]  %s77, 512, %s79, [#allocation10], 64, 64, 4
    $region25: #{tpu_custom_call.1} parent=1 // pred_fallthru
      _
    // Predicated region
    $region26: #{tpu_custom_call.1} parent=1 // pred_check
      _
    $region27: #{tpu_custom_call.1} parent=1 // pred_check_branch
      %86 = sbr.rel (0) target = $region29
    $region28: #{tpu_custom_call.1} parent=1 // pred_region
      %88 = vsyncadd [#allocation13], 0
      %s90 = sshll.u32 %s6, 4
      %s91 = int_to_ptr.hbm [resolvable:$true] %s90
      %s92 = sshll.u32 [#allocation12], 4
      %s93 = int_to_ptr.vmem [resolvable:$true] %s92
      %95 = dma.hbm_to_vmem [thread:$0]  %s91, 32, %s93, [#allocation13]
    $region29: #{tpu_custom_call.1} parent=1 // pred_fallthru
      _
    // Predicated region
    $region30: #{tpu_custom_call.1} parent=1 // pred_check
      _
    $region31: #{tpu_custom_call.1} parent=1 // pred_check_branch
      %97 = sbr.rel (0) target = $region33
    $region32: #{tpu_custom_call.1} parent=1 // pred_region
      %99 = vsyncadd [#allocation13], 0
      %s100 = sshll.u32 %s7, 4
      %s101 = int_to_ptr.hbm [resolvable:$true] %s100
      %s102 = sshll.u32 [#allocation14], 4
      %s103 = int_to_ptr.vmem [resolvable:$true] %s102
      %108 = dma.hbm_to_vmem [thread:$0]  %s101, 2048, %s103, [#allocation13], 128, 128, 8
    $region33: #{tpu_custom_call.1} parent=1 // pred_fallthru
      _
    // Predicated region
    $region34: #{tpu_custom_call.1} parent=1 // pred_check
      _
    $region35: #{tpu_custom_call.1} parent=1 // pred_check_branch
      %110 = sbr.rel (0) target = $region37
    $region36: #{tpu_custom_call.1} parent=1 // pred_region
      _
    $region37: #{tpu_custom_call.1} parent=1 // pred_fallthru
      _
    // Predicated region
    $region38: #{tpu_custom_call.1} parent=1 // pred_check
      _
    $region39: #{tpu_custom_call.1} parent=1 // pred_check_branch
      %112 = sbr.rel (0) target = $region41
    $region40: #{tpu_custom_call.1} parent=1 // pred_region
      %114 = vsyncadd [#allocation16], 0
      %s115 = sshll.u32 %s9, 4
      %s116 = int_to_ptr.hbm [resolvable:$true] %s115
      %s117 = sshll.u32 [#allocation15], 4
      %s118 = int_to_ptr.vmem [resolvable:$true] %s117
      %123 = dma.hbm_to_vmem [thread:$0]  %s116, 4096, %s118, [#allocation16], 128, 128, 8
    $region41: #{tpu_custom_call.1} parent=1 // pred_fallthru
      _
    // Predicated region
    $region42: #{tpu_custom_call.1} parent=1 // pred_check
      _
    $region43: #{tpu_custom_call.1} parent=1 // pred_check_branch
      %125 = sbr.rel (0) target = $region45
    $region44: #{tpu_custom_call.1} parent=1 // pred_region
      _
    $region45: #{tpu_custom_call.1} parent=1 // pred_fallthru
      _
    // Predicated region
    $region46: #{tpu_custom_call.1} parent=1 // pred_check
      _
    $region47: #{tpu_custom_call.1} parent=1 // pred_check_branch
      %127 = sbr.rel (0) target = $region49
    $region48: #{tpu_custom_call.1} parent=1 // pred_region
      %129 = dma.done [#allocation4], 128
    $region49: #{tpu_custom_call.1} parent=1 // pred_fallthru
      _
    // Predicated region
    $region50: #{tpu_custom_call.1} parent=1 // pred_check
      _
    $region51: #{tpu_custom_call.1} parent=1 // pred_check_branch
      %131 = sbr.rel (0) target = $region53
    $region52: #{tpu_custom_call.1} parent=1 // pred_region
      %133 = dma.done [#allocation7], 128
    $region53: #{tpu_custom_call.1} parent=1 // pred_fallthru
      _
    // Predicated region
    $region54: #{tpu_custom_call.1} parent=1 // pred_check
      _
    $region55: #{tpu_custom_call.1} parent=1 // pred_check_branch
      %135 = sbr.rel (0) target = $region57
    $region56: #{tpu_custom_call.1} parent=1 // pred_region
      %137 = dma.done [#allocation7], 32
    $region57: #{tpu_custom_call.1} parent=1 // pred_fallthru
      _
    // Predicated region
    $region58: #{tpu_custom_call.1} parent=1 // pred_check
      _
    $region59: #{tpu_custom_call.1} parent=1 // pred_check_branch
      %139 = sbr.rel (0) target = $region61
    $region60: #{tpu_custom_call.1} parent=1 // pred_region
      %141 = dma.done [#allocation10], 256
    $region61: #{tpu_custom_call.1} parent=1 // pred_fallthru
      _
    // Predicated region
    $region62: #{tpu_custom_call.1} parent=1 // pred_check
      _
    $region63: #{tpu_custom_call.1} parent=1 // pred_check_branch
      %143 = sbr.rel (0) target = $region65
    $region64: #{tpu_custom_call.1} parent=1 // pred_region
      %145 = dma.done [#allocation10], 512
    $region65: #{tpu_custom_call.1} parent=1 // pred_fallthru
      _
    // Predicated region
    $region66: #{tpu_custom_call.1} parent=1 // pred_check
      _
    $region67: #{tpu_custom_call.1} parent=1 // pred_check_branch
      %147 = sbr.rel (0) target = $region69
    $region68: #{tpu_custom_call.1} parent=1 // pred_region
      %149 = dma.done [#allocation13], 32
    $region69: #{tpu_custom_call.1} parent=1 // pred_fallthru
      _
    // Predicated region
    $region70: #{tpu_custom_call.1} parent=1 // pred_check
      _
    $region71: #{tpu_custom_call.1} parent=1 // pred_check_branch
      %151 = sbr.rel (0) target = $region73
    $region72: #{tpu_custom_call.1} parent=1 // pred_region
      %153 = dma.done [#allocation13], 2048
    $region73: #{tpu_custom_call.1} parent=1 // pred_fallthru
      _
    // Predicated region
    $region74: #{tpu_custom_call.1} parent=1 // pred_check
      _
    $region75: #{tpu_custom_call.1} parent=1 // pred_check_branch
      %155 = sbr.rel (0) target = $region77
    $region76: #{tpu_custom_call.1} parent=1 // pred_region
      %157 = dma.done [#allocation16], 4096
    $region77: #{tpu_custom_call.1} parent=1 // pred_fallthru
      _
    %p159 = scmp.eq.s32.totalorder 0, 0
    // Predicated region
    $region78: #{tpu_custom_call.1} parent=1 // pred_check
      %p160 = pneg %p159
    $region79: #{tpu_custom_call.1} parent=1 // pred_check_branch
      %162 = sbr.rel (%p160) target = $region81
    $region80: #{tpu_custom_call.1} parent=1 // pred_region
      %v163 = vld [vmem:[#allocation3] sm:$0xff]
      %v164 = vld [vmem:[#allocation6] sm:$0xf]
      %v165 = vld [vmem:[#allocation6 + $0x4] sm:$0xf]
      %v166 = vld [vmem:[#allocation8] sm:$0x3]
      %v167 = vpack.c.bf16 %v163, %v163
      %v170 = vunpack.c.l.b16 %v164
      %v171 = vunpack.c.l.b16 %v165
      %v172 = vpack.c.b16 %v171, %v170
      %vm174 = vcmask 130048
      %v176 = vsel %vm174, %v167, 0
      %178 = vmatpush.bf16.msra.mxu0 0
      %179 = vmatpush.bf16.msra.mxu0 0
      %180 = vmatpush.bf16.msra.mxu0 0
      %181 = vmatpush.bf16.msra.mxu0 0
      %182 = vmatpush.bf16.msra.mxu0 0
      %183 = vmatpush.bf16.msra.mxu0 0
      %184 = vmatpush.bf16.msra.mxu0 0
      %185 = vmatpush.bf16.msra.mxu0 %v172
      %186 = vmatmul.bf16.gmra.mxu0 %v176
      %v187 = vpop.f32.mrf.mxu0
      %v188 = vadd.f32 0.0, %v187
      %v189 = vpop.f32.mrf.mxu0
      %190 = vdwg.mxu0
      %vm191 = vcmask 261120
      %v192 = vsel %vm191, %v188, 0.0
      %v193 = vrot.slane %v192, 4
      %v194 = vadd.f32 %v192, %v193
      %v195 = vrot.slane %v194, 2
      %v196 = vadd.f32 %v194, %v195
      %v197 = vrot.slane %v196, 1
      %v198 = vadd.f32 %v196, %v197
      %v199 = vrcp.pop 8.0
      %v200 = vmul.f32 8.0, %v199
      %v201 = vsub.f32 1.0, %v200
      %v202 = vmul.f32 %v199, %v201
      %v203 = vadd.f32 %v199, %v202
      %vm204 = vweird.f32 %v199
      %v205 = vsel %vm204, %v199, %v203
      %v206 = vmul.f32 %v198, %v205
      %v207 = vsub.f32 %v188, %v206
      %v208 = vmul.f32 %v207, %v207
      %v209 = vsel %vm191, %v208, 0.0
      %v210 = vrot.slane %v209, 4
      %v211 = vadd.f32 %v209, %v210
      %v212 = vrot.slane %v211, 2
      %v213 = vadd.f32 %v211, %v212
      %v214 = vrot.slane %v213, 1
      %v215 = vadd.f32 %v213, %v214
      %v216 = vmul.f32 %v215, %v205
      %v217 = vadd.f32 %v216, 1e-05
      %v218 = vrsqrt.pop %v217
      %v219 = vmul.f32 %v218, %v217
      %v220 = vmul.f32 %v219, %v218
      %v221 = vmul.f32 0.5, %v220
      %v222 = vsub.f32 1.5, %v221
      %v223 = vmul.f32 %v218, %v222
      %vm224 = vweird.f32 %v217
      %vm225 = vweird.f32 %v218
      %vm226 = vmor %vm224, %vm225
      %v227 = vsel %vm226, %v218, %v223
      %v228 = vmul.f32 %v227, %v166
      %v229 = vperm.slane %v228, 0
      %v230 = vmul.f32 %v207, %v229
      %v231 = vperm.slane %v166, 1
      %v232 = vadd.f32 %v230, %v231
      %v233 = vmax.f32 %v232, 0.0
      %v234 = vld [vmem:[#allocation9] sm:$0xf]
      %v235 = vld [vmem:[#allocation9 + $0x4] sm:$0xf]
      %v236 = vld [vmem:[#allocation9 + $0x8] sm:$0xf]
      %v237 = vld [vmem:[#allocation9 + $0xc] sm:$0xf]
      %v238 = vld [vmem:[%s4] sm:$0x3]
      %v239 = vpack.c.bf16 %v233, %v233
      %v244 = vunpack.c.l.b16 %v234
      %v245 = vunpack.c.l.b16 %v235
      %v246 = vunpack.c.l.b16 %v236
      %v247 = vunpack.c.l.b16 %v237
      %v248 = vpack.c.b16 %v245, %v244
      %v249 = vpack.c.b16 %v247, %v246
      %v253 = vsel %vm191, %v239, 0
      %255 = vmatpush.bf16.msra.mxu0 0
      %256 = vmatpush.bf16.msra.mxu0 0
      %257 = vmatpush.bf16.msra.mxu0 0
      %258 = vmatpush.bf16.msra.mxu0 0
      %259 = vmatpush.bf16.msra.mxu0 0
      %260 = vmatpush.bf16.msra.mxu0 0
      %261 = vmatpush.bf16.msra.mxu0 %v249
      %262 = vmatpush.bf16.msra.mxu0 %v248
      %263 = vmatmul.bf16.gmra.mxu0 %v253
      %v264 = vpop.f32.mrf.mxu0
      %v265 = vadd.f32 0.0, %v264
      %v266 = vpop.f32.mrf.mxu0
      %267 = vdwg.mxu0
      %vm268 = vcmask 523264
      %v269 = vsel %vm268, %v265, 0.0
      %v270 = vrot.slane %v269, 4
      %v271 = vadd.f32 %v269, %v270
      %v272 = vrot.slane %v271, 2
      %v273 = vadd.f32 %v271, %v272
      %v274 = vrot.slane %v273, 1
      %v275 = vadd.f32 %v273, %v274
      %v276 = vmul.f32 %v275, %v205
      %v277 = vsub.f32 %v265, %v276
      %v278 = vmul.f32 %v277, %v277
      %v279 = vsel %vm268, %v278, 0.0
      %v280 = vrot.slane %v279, 4
      %v281 = vadd.f32 %v279, %v280
      %v282 = vrot.slane %v281, 2
      %v283 = vadd.f32 %v281, %v282
      %v284 = vrot.slane %v283, 1
      %v285 = vadd.f32 %v283, %v284
      %v286 = vmul.f32 %v285, %v205
      %v287 = vadd.f32 %v286, 1e-05
      %v288 = vrsqrt.pop %v287
      %v289 = vmul.f32 %v288, %v287
      %v290 = vmul.f32 %v289, %v288
      %v291 = vmul.f32 0.5, %v290
      %v292 = vsub.f32 1.5, %v291
      %v293 = vmul.f32 %v288, %v292
      %vm294 = vweird.f32 %v287
      %vm295 = vweird.f32 %v288
      %vm296 = vmor %vm294, %vm295
      %v297 = vsel %vm296, %v288, %v293
      %v298 = vmul.f32 %v297, %v238
      %v299 = vperm.slane %v298, 0
      %v300 = vmul.f32 %v277, %v299
      %v301 = vperm.slane %v238, 1
      %v302 = vadd.f32 %v300, %v301
      %v303 = vmax.f32 %v302, 0.0
      %v304 = vld [vmem:[#allocation11] sm:$0xf]
      %v305 = vld [vmem:[#allocation11 + $0x4] sm:$0xf]
      %v306 = vld [vmem:[#allocation11 + $0x8] sm:$0xf]
      %v307 = vld [vmem:[#allocation11 + $0xc] sm:$0xf]
      %v308 = vld [vmem:[#allocation11 + $0x10] sm:$0xf]
      %v309 = vld [vmem:[#allocation11 + $0x14] sm:$0xf]
      %v310 = vld [vmem:[#allocation11 + $0x18] sm:$0xf]
      %v311 = vld [vmem:[#allocation11 + $0x1c] sm:$0xf]
      %v312 = vld [vmem:[#allocation12] sm:$0x3]
      %v313 = vpack.c.bf16 %v303, %v303
      %v322 = vunpack.c.l.b16 %v304
      %v323 = vunpack.c.l.b16 %v305
      %v324 = vunpack.c.l.b16 %v306
      %v325 = vunpack.c.l.b16 %v307
      %v326 = vunpack.c.l.b16 %v308
      %v327 = vunpack.c.l.b16 %v309
      %v328 = vunpack.c.l.b16 %v310
      %v329 = vunpack.c.l.b16 %v311
      %v330 = vpack.c.b16 %v323, %v322
      %v331 = vpack.c.b16 %v325, %v324
      %v332 = vpack.c.b16 %v327, %v326
      %v333 = vpack.c.b16 %v329, %v328
      %v339 = vsel %vm268, %v313, 0
      %341 = vmatpush.bf16.msra.mxu0 0
      %342 = vmatpush.bf16.msra.mxu0 0
      %343 = vmatpush.bf16.msra.mxu0 0
      %344 = vmatpush.bf16.msra.mxu0 0
      %345 = vmatpush.bf16.msra.mxu0 %v333
      %346 = vmatpush.bf16.msra.mxu0 %v332
      %347 = vmatpush.bf16.msra.mxu0 %v331
      %348 = vmatpush.bf16.msra.mxu0 %v330
      %349 = vmatmul.bf16.gmra.mxu0 %v339
      %v350 = vpop.f32.mrf.mxu0
      %v351 = vadd.f32 0.0, %v350
      %v352 = vpop.f32.mrf.mxu0
      %353 = vdwg.mxu0
      %v354 = vrot.slane %v351, 4
      %v355 = vadd.f32 %v351, %v354
      %v356 = vrot.slane %v355, 2
      %v357 = vadd.f32 %v355, %v356
      %v358 = vrot.slane %v357, 1
      %v359 = vadd.f32 %v357, %v358
      %v360 = vmul.f32 %v359, %v205
      %v361 = vsub.f32 %v351, %v360
      %v362 = vmul.f32 %v361, %v361
      %v363 = vrot.slane %v362, 4
      %v364 = vadd.f32 %v362, %v363
      %v365 = vrot.slane %v364, 2
      %v366 = vadd.f32 %v364, %v365
      %v367 = vrot.slane %v366, 1
      %v368 = vadd.f32 %v366, %v367
      %v369 = vmul.f32 %v368, %v205
      %v370 = vadd.f32 %v369, 1e-05
      %v371 = vrsqrt.pop %v370
      %v372 = vmul.f32 %v371, %v370
      %v373 = vmul.f32 %v372, %v371
      %v374 = vmul.f32 0.5, %v373
      %v375 = vsub.f32 1.5, %v374
      %v376 = vmul.f32 %v371, %v375
      %vm377 = vweird.f32 %v370
      %vm378 = vweird.f32 %v371
      %vm379 = vmor %vm377, %vm378
      %v380 = vsel %vm379, %v371, %v376
      %v381 = vmul.f32 %v380, %v312
      %v382 = vperm.slane %v381, 0
      %v383 = vmul.f32 %v361, %v382
      %v384 = vperm.slane %v312, 1
      %v385 = vadd.f32 %v383, %v384
      %v386 = vmax.f32 %v385, 0.0
      %v387 = vld [vmem:[#allocation14] sm:$0xff]
      %v388 = vld [vmem:[#allocation14 + $0x8] sm:$0xff]
      %v389 = vld [vmem:[#allocation14 + $0x10] sm:$0xff]
      %v390 = vld [vmem:[#allocation14 + $0x18] sm:$0xff]
      %v391 = vld [vmem:[#allocation14 + $0x20] sm:$0xff]
      %v392 = vld [vmem:[#allocation14 + $0x28] sm:$0xff]
      %v393 = vld [vmem:[#allocation14 + $0x30] sm:$0xff]
      %v394 = vld [vmem:[#allocation14 + $0x38] sm:$0xff]
      %v395 = vld [vmem:[#allocation14 + $0x40] sm:$0xff]
      %v396 = vld [vmem:[#allocation14 + $0x48] sm:$0xff]
      %v397 = vld [vmem:[#allocation14 + $0x50] sm:$0xff]
      %v398 = vld [vmem:[#allocation14 + $0x58] sm:$0xff]
      %v399 = vld [vmem:[#allocation14 + $0x60] sm:$0xff]
      %v400 = vld [vmem:[#allocation14 + $0x68] sm:$0xff]
      %v401 = vld [vmem:[#allocation14 + $0x70] sm:$0xff]
      %v402 = vld [vmem:[#allocation14 + $0x78] sm:$0xff]
      %v403 = vld [vmem:[%s8] sm:$0xf]
      %v404 = vpack.c.bf16 %v386, %v386
      %v421 = vunpack.c.l.b16 %v387
      %v422 = vunpack.c.h.b16 %v387
      %v423 = vunpack.c.l.b16 %v388
      %v424 = vunpack.c.h.b16 %v388
      %v425 = vunpack.c.l.b16 %v389
      %v426 = vunpack.c.h.b16 %v389
      %v427 = vunpack.c.l.b16 %v390
      %v428 = vunpack.c.h.b16 %v390
      %v429 = vunpack.c.l.b16 %v391
      %v430 = vunpack.c.h.b16 %v391
      %v431 = vunpack.c.l.b16 %v392
      %v432 = vunpack.c.h.b16 %v392
      %v433 = vunpack.c.l.b16 %v393
      %v434 = vunpack.c.h.b16 %v393
      %v435 = vunpack.c.l.b16 %v394
      %v436 = vunpack.c.h.b16 %v394
      %v437 = vunpack.c.l.b16 %v395
      %v438 = vunpack.c.h.b16 %v395
      %v439 = vunpack.c.l.b16 %v396
      %v440 = vunpack.c.h.b16 %v396
      %v441 = vunpack.c.l.b16 %v397
      %v442 = vunpack.c.h.b16 %v397
      %v443 = vunpack.c.l.b16 %v398
      %v444 = vunpack.c.h.b16 %v398
      %v445 = vunpack.c.l.b16 %v399
      %v446 = vunpack.c.h.b16 %v399
      %v447 = vunpack.c.l.b16 %v400
      %v448 = vunpack.c.h.b16 %v400
      %v449 = vunpack.c.l.b16 %v401
      %v450 = vunpack.c.h.b16 %v401
      %v451 = vunpack.c.l.b16 %v402
      %v452 = vunpack.c.h.b16 %v402
      %v453 = vpack.c.b16 %v423, %v421
      %v454 = vpack.c.b16 %v424, %v422
      %v455 = vpack.c.b16 %v427, %v425
      %v456 = vpack.c.b16 %v428, %v426
      %v457 = vpack.c.b16 %v431, %v429
      %v458 = vpack.c.b16 %v432, %v430
      %v459 = vpack.c.b16 %v435, %v433
      %v460 = vpack.c.b16 %v436, %v434
      %v461 = vpack.c.b16 %v439, %v437
      %v462 = vpack.c.b16 %v440, %v438
      %v463 = vpack.c.b16 %v443, %v441
      %v464 = vpack.c.b16 %v444, %v442
      %v465 = vpack.c.b16 %v447, %v445
      %v466 = vpack.c.b16 %v448, %v446
      %v467 = vpack.c.b16 %v451, %v449
      %v468 = vpack.c.b16 %v452, %v450
      %485 = vmatpush.bf16.msra.mxu0 %v467
      %486 = vmatpush.bf16.msra.mxu0 %v465
      %487 = vmatpush.bf16.msra.mxu0 %v463
      %488 = vmatpush.bf16.msra.mxu0 %v461
      %489 = vmatpush.bf16.msra.mxu0 %v459
      %490 = vmatpush.bf16.msra.mxu0 %v457
      %491 = vmatpush.bf16.msra.mxu0 %v455
      %492 = vmatpush.bf16.msra.mxu0 %v453
      %493 = vmatmul.bf16.gmra.mxu0 %v404
      %v494 = vpop.f32.mrf.mxu0
      %v495 = vadd.f32 0.0, %v494
      %v496 = vpop.f32.mrf.mxu0
      %497 = vdwg.mxu0
      %498 = vmatpush.bf16.msra.mxu0 %v468
      %499 = vmatpush.bf16.msra.mxu0 %v466
      %500 = vmatpush.bf16.msra.mxu0 %v464
      %501 = vmatpush.bf16.msra.mxu0 %v462
      %502 = vmatpush.bf16.msra.mxu0 %v460
      %503 = vmatpush.bf16.msra.mxu0 %v458
      %504 = vmatpush.bf16.msra.mxu0 %v456
      %505 = vmatpush.bf16.msra.mxu0 %v454
      %506 = vmatmul.bf16.gmra.mxu0 %v404
      %v507 = vpop.f32.mrf.mxu0
      %v508 = vadd.f32 0.0, %v507
      %v509 = vpop.f32.mrf.mxu0
      %510 = vdwg.mxu0
      %v511 = vrot.slane %v495, 4
      %v512 = vadd.f32 %v495, %v511
      %v513 = vrot.slane %v512, 2
      %v514 = vadd.f32 %v512, %v513
      %v515 = vrot.slane %v514, 1
      %v516 = vadd.f32 %v514, %v515
      %v517 = vrot.slane %v508, 4
      %v518 = vadd.f32 %v508, %v517
      %v519 = vrot.slane %v518, 2
      %v520 = vadd.f32 %v518, %v519
      %v521 = vrot.slane %v520, 1
      %v522 = vadd.f32 %v520, %v521
      %v523 = vmul.f32 %v516, %v205
      %v524 = vmul.f32 %v522, %v205
      %v525 = vsub.f32 %v495, %v523
      %v526 = vsub.f32 %v508, %v524
      %v527 = vmul.f32 %v525, %v525
      %v528 = vmul.f32 %v526, %v526
      %v529 = vrot.slane %v527, 4
      %v530 = vadd.f32 %v527, %v529
      %v531 = vrot.slane %v530, 2
      %v532 = vadd.f32 %v530, %v531
      %v533 = vrot.slane %v532, 1
      %v534 = vadd.f32 %v532, %v533
      %v535 = vrot.slane %v528, 4
      %v536 = vadd.f32 %v528, %v535
      %v537 = vrot.slane %v536, 2
      %v538 = vadd.f32 %v536, %v537
      %v539 = vrot.slane %v538, 1
      %v540 = vadd.f32 %v538, %v539
      %v541 = vmul.f32 %v534, %v205
      %v542 = vmul.f32 %v540, %v205
      %v543 = vadd.f32 %v541, 1e-05
      %v544 = vadd.f32 %v542, 1e-05
      %v545 = vrsqrt.pop %v543
      %v546 = vmul.f32 %v545, %v543
      %v547 = vmul.f32 %v546, %v545
      %v548 = vmul.f32 0.5, %v547
      %v549 = vsub.f32 1.5, %v548
      %v550 = vmul.f32 %v545, %v549
      %vm551 = vweird.f32 %v543
      %vm552 = vweird.f32 %v545
      %vm553 = vmor %vm551, %vm552
      %v554 = vsel %vm553, %v545, %v550
      %v555 = vrsqrt.pop %v544
      %v556 = vmul.f32 %v555, %v544
      %v557 = vmul.f32 %v556, %v555
      %v558 = vmul.f32 0.5, %v557
      %v559 = vsub.f32 1.5, %v558
      %v560 = vmul.f32 %v555, %v559
      %vm561 = vweird.f32 %v544
      %vm562 = vweird.f32 %v555
      %vm563 = vmor %vm561, %vm562
      %v564 = vsel %vm563, %v555, %v560
      %v566 = vperm.slane %v403, 0
      %v567 = vperm.slane %v403, 2
      %v570 = vmul.f32 %v554, %v566
      %v571 = vmul.f32 %v564, %v567
      %v572 = vperm.slane %v570, 0
      %v573 = vperm.slane %v571, 0
      %v574 = vmul.f32 %v525, %v572
      %v575 = vmul.f32 %v526, %v573
      %v576 = vperm.slane %v403, 1
      %v577 = vperm.slane %v403, 3
      %v580 = vperm.slane %v576, 1
      %v581 = vperm.slane %v577, 1
      %v582 = vadd.f32 %v574, %v580
      %v583 = vadd.f32 %v575, %v581
      %v584 = vmax.f32 %v582, 0.0
      %v585 = vmax.f32 %v583, 0.0
      %v586 = vpack.c.bf16 %v585, %v584
      %587 = vst [vmem:[#allocation2] sm:$0xff] %v586
    $region81: #{tpu_custom_call.1} parent=1 // pred_fallthru
      _
    %v588 = vld [vmem:[#allocation2] sm:$0xff]
    %v589 = vld [vmem:[#allocation15] sm:$0xff]
    %v590 = vld [vmem:[#allocation15 + $0x8] sm:$0xff]
    %v591 = vld [vmem:[#allocation15 + $0x10] sm:$0xff]
    %v592 = vld [vmem:[#allocation15 + $0x18] sm:$0xff]
    %v593 = vld [vmem:[#allocation15 + $0x20] sm:$0xff]
    %v594 = vld [vmem:[#allocation15 + $0x28] sm:$0xff]
    %v595 = vld [vmem:[#allocation15 + $0x30] sm:$0xff]
    %v596 = vld [vmem:[#allocation15 + $0x38] sm:$0xff]
    %v597 = vld [vmem:[#allocation15 + $0x40] sm:$0xff]
    %v598 = vld [vmem:[#allocation15 + $0x48] sm:$0xff]
    %v599 = vld [vmem:[#allocation15 + $0x50] sm:$0xff]
    %v600 = vld [vmem:[#allocation15 + $0x58] sm:$0xff]
    %v601 = vld [vmem:[#allocation15 + $0x60] sm:$0xff]
    %v602 = vld [vmem:[#allocation15 + $0x68] sm:$0xff]
    %v603 = vld [vmem:[#allocation15 + $0x70] sm:$0xff]
    %v604 = vld [vmem:[#allocation15 + $0x78] sm:$0xff]
    %v605 = vld [vmem:[#allocation15 + $0x80] sm:$0xff]
    %v606 = vld [vmem:[#allocation15 + $0x88] sm:$0xff]
    %v607 = vld [vmem:[#allocation15 + $0x90] sm:$0xff]
    %v608 = vld [vmem:[#allocation15 + $0x98] sm:$0xff]
    %v609 = vld [vmem:[#allocation15 + $0xa0] sm:$0xff]
    %v610 = vld [vmem:[#allocation15 + $0xa8] sm:$0xff]
    %v611 = vld [vmem:[#allocation15 + $0xb0] sm:$0xff]
    %v612 = vld [vmem:[#allocation15 + $0xb8] sm:$0xff]
    %v613 = vld [vmem:[#allocation15 + $0xc0] sm:$0xff]
    %v614 = vld [vmem:[#allocation15 + $0xc8] sm:$0xff]
    %v615 = vld [vmem:[#allocation15 + $0xd0] sm:$0xff]
    %v616 = vld [vmem:[#allocation15 + $0xd8] sm:$0xff]
    %v617 = vld [vmem:[#allocation15 + $0xe0] sm:$0xff]
    %v618 = vld [vmem:[#allocation15 + $0xe8] sm:$0xff]
    %v619 = vld [vmem:[#allocation15 + $0xf0] sm:$0xff]
    %v620 = vld [vmem:[#allocation15 + $0xf8] sm:$0xff]
    %v621 = vld [vmem:[%s10] sm:$0x3]
    %v623 = vperm.slane %v621, 0
    %v624 = vperm.slane %v621, 1
    %v628 = vunpack.c.l.b16 %v588
    %v629 = vunpack.c.h.b16 %v588
    %v630 = vpack.c.b16 %v628, %v628
    %v631 = vpack.c.b16 %v629, %v629
    %v666 = vunpack.c.l.b16 %v589
    %v667 = vunpack.c.h.b16 %v589
    %v668 = vunpack.c.l.b16 %v590
    %v669 = vunpack.c.h.b16 %v590
    %v670 = vunpack.c.l.b16 %v591
    %v671 = vunpack.c.h.b16 %v591
    %v672 = vunpack.c.l.b16 %v592
    %v673 = vunpack.c.h.b16 %v592
    %v674 = vunpack.c.l.b16 %v593
    %v675 = vunpack.c.h.b16 %v593
    %v676 = vunpack.c.l.b16 %v594
    %v677 = vunpack.c.h.b16 %v594
    %v678 = vunpack.c.l.b16 %v595
    %v679 = vunpack.c.h.b16 %v595
    %v680 = vunpack.c.l.b16 %v596
    %v681 = vunpack.c.h.b16 %v596
    %v682 = vunpack.c.l.b16 %v597
    %v683 = vunpack.c.h.b16 %v597
    %v684 = vunpack.c.l.b16 %v598
    %v685 = vunpack.c.h.b16 %v598
    %v686 = vunpack.c.l.b16 %v599
    %v687 = vunpack.c.h.b16 %v599
    %v688 = vunpack.c.l.b16 %v600
    %v689 = vunpack.c.h.b16 %v600
    %v690 = vunpack.c.l.b16 %v601
    %v691 = vunpack.c.h.b16 %v601
    %v692 = vunpack.c.l.b16 %v602
    %v693 = vunpack.c.h.b16 %v602
    %v694 = vunpack.c.l.b16 %v603
    %v695 = vunpack.c.h.b16 %v603
    %v696 = vunpack.c.l.b16 %v604
    %v697 = vunpack.c.h.b16 %v604
    %v698 = vunpack.c.l.b16 %v605
    %v699 = vunpack.c.h.b16 %v605
    %v700 = vunpack.c.l.b16 %v606
    %v701 = vunpack.c.h.b16 %v606
    %v702 = vunpack.c.l.b16 %v607
    %v703 = vunpack.c.h.b16 %v607
    %v704 = vunpack.c.l.b16 %v608
    %v705 = vunpack.c.h.b16 %v608
    %v706 = vunpack.c.l.b16 %v609
    %v707 = vunpack.c.h.b16 %v609
    %v708 = vunpack.c.l.b16 %v610
    %v709 = vunpack.c.h.b16 %v610
    %v710 = vunpack.c.l.b16 %v611
    %v711 = vunpack.c.h.b16 %v611
    %v712 = vunpack.c.l.b16 %v612
    %v713 = vunpack.c.h.b16 %v612
    %v714 = vunpack.c.l.b16 %v613
    %v715 = vunpack.c.h.b16 %v613
    %v716 = vunpack.c.l.b16 %v614
    %v717 = vunpack.c.h.b16 %v614
    %v718 = vunpack.c.l.b16 %v615
    %v719 = vunpack.c.h.b16 %v615
    %v720 = vunpack.c.l.b16 %v616
    %v721 = vunpack.c.h.b16 %v616
    %v722 = vunpack.c.l.b16 %v617
    %v723 = vunpack.c.h.b16 %v617
    %v724 = vunpack.c.l.b16 %v618
    %v725 = vunpack.c.h.b16 %v618
    %v726 = vunpack.c.l.b16 %v619
    %v727 = vunpack.c.h.b16 %v619
    %v728 = vunpack.c.l.b16 %v620
    %v729 = vunpack.c.h.b16 %v620
    %v730 = vpack.c.b16 %v668, %v666
    %v731 = vpack.c.b16 %v669, %v667
    %v732 = vpack.c.b16 %v672, %v670
    %v733 = vpack.c.b16 %v673, %v671
    %v734 = vpack.c.b16 %v676, %v674
    %v735 = vpack.c.b16 %v677, %v675
    %v736 = vpack.c.b16 %v680, %v678
    %v737 = vpack.c.b16 %v681, %v679
    %v738 = vpack.c.b16 %v684, %v682
    %v739 = vpack.c.b16 %v685, %v683
    %v740 = vpack.c.b16 %v688, %v686
    %v741 = vpack.c.b16 %v689, %v687
    %v742 = vpack.c.b16 %v692, %v690
    %v743 = vpack.c.b16 %v693, %v691
    %v744 = vpack.c.b16 %v696, %v694
    %v745 = vpack.c.b16 %v697, %v695
    %v746 = vpack.c.b16 %v700, %v698
    %v747 = vpack.c.b16 %v701, %v699
    %v748 = vpack.c.b16 %v704, %v702
    %v749 = vpack.c.b16 %v705, %v703
    %v750 = vpack.c.b16 %v708, %v706
    %v751 = vpack.c.b16 %v709, %v707
    %v752 = vpack.c.b16 %v712, %v710
    %v753 = vpack.c.b16 %v713, %v711
    %v754 = vpack.c.b16 %v716, %v714
    %v755 = vpack.c.b16 %v717, %v715
    %v756 = vpack.c.b16 %v720, %v718
    %v757 = vpack.c.b16 %v721, %v719
    %v758 = vpack.c.b16 %v724, %v722
    %v759 = vpack.c.b16 %v725, %v723
    %v760 = vpack.c.b16 %v728, %v726
    %v761 = vpack.c.b16 %v729, %v727
    %794 = vmatpush.bf16.msra.mxu0 %v744
    %795 = vmatpush.bf16.msra.mxu0 %v742
    %796 = vmatpush.bf16.msra.mxu0 %v740
    %797 = vmatpush.bf16.msra.mxu0 %v738
    %798 = vmatpush.bf16.msra.mxu0 %v736
    %799 = vmatpush.bf16.msra.mxu0 %v734
    %800 = vmatpush.bf16.msra.mxu0 %v732
    %801 = vmatpush.bf16.msra.mxu0 %v730
    %802 = vmatmul.bf16.gmra.mxu0 %v630
    %v803 = vpop.f32.mrf.mxu0
    %v804 = vadd.f32 %v623, %v803
    %v805 = vpop.f32.mrf.mxu0
    %806 = vdwg.mxu0
    %807 = vmatpush.bf16.msra.mxu0 %v760
    %808 = vmatpush.bf16.msra.mxu0 %v758
    %809 = vmatpush.bf16.msra.mxu0 %v756
    %810 = vmatpush.bf16.msra.mxu0 %v754
    %811 = vmatpush.bf16.msra.mxu0 %v752
    %812 = vmatpush.bf16.msra.mxu0 %v750
    %813 = vmatpush.bf16.msra.mxu0 %v748
    %814 = vmatpush.bf16.msra.mxu0 %v746
    %815 = vmatmul.bf16.gmra.mxu0 %v631
    %v816 = vpop.f32.mrf.mxu0
    %v817 = vadd.f32 %v804, %v816
    %v818 = vpop.f32.mrf.mxu0
    %819 = vdwg.mxu0
    %820 = vmatpush.bf16.msra.mxu0 %v745
    %821 = vmatpush.bf16.msra.mxu0 %v743
    %822 = vmatpush.bf16.msra.mxu0 %v741
    %823 = vmatpush.bf16.msra.mxu0 %v739
    %824 = vmatpush.bf16.msra.mxu0 %v737
    %825 = vmatpush.bf16.msra.mxu0 %v735
    %826 = vmatpush.bf16.msra.mxu0 %v733
    %827 = vmatpush.bf16.msra.mxu0 %v731
    %828 = vmatmul.bf16.gmra.mxu0 %v630
    %v829 = vpop.f32.mrf.mxu0
    %v830 = vadd.f32 %v624, %v829
    %v831 = vpop.f32.mrf.mxu0
    %832 = vdwg.mxu0
    %833 = vmatpush.bf16.msra.mxu0 %v761
    %834 = vmatpush.bf16.msra.mxu0 %v759
    %835 = vmatpush.bf16.msra.mxu0 %v757
    %836 = vmatpush.bf16.msra.mxu0 %v755
    %837 = vmatpush.bf16.msra.mxu0 %v753
    %838 = vmatpush.bf16.msra.mxu0 %v751
    %839 = vmatpush.bf16.msra.mxu0 %v749
    %840 = vmatpush.bf16.msra.mxu0 %v747
    %841 = vmatmul.bf16.gmra.mxu0 %v631
    %v842 = vpop.f32.mrf.mxu0
    %v843 = vadd.f32 %v830, %v842
    %v844 = vpop.f32.mrf.mxu0
    %845 = vdwg.mxu0
    %v846 = vsub.f32 0.0, %v817
    %v847 = vsub.f32 0.0, %v843
    %v848 = vmul.f32 %v846, 1.442695
    %v849 = vpow.pop %v848
    %v850 = vmul.f32 %v847, 1.442695
    %v851 = vpow.pop %v850
    %v852 = vadd.f32 %v849, 1.0
    %v853 = vadd.f32 %v851, 1.0
    %v854 = vrcp.pop %v852
    %v855 = vrcp.pop %v853
    %856 = vst [vmem:[#allocation17] sm:$0xff] %v854
    %857 = vst [vmem:[#allocation17 + $0x8] sm:$0xff] %v855
    // Predicated region
    $region82: #{tpu_custom_call.1} parent=1 // pred_check
      _
    $region83: #{tpu_custom_call.1} parent=1 // pred_check_branch
      %859 = sbr.rel (0) target = $region85
    $region84: #{tpu_custom_call.1} parent=1 // pred_region
      %861 = vsyncadd [#allocation5], 0
      %s863 = sshll.u32 [#allocation17], 4
      %s864 = int_to_ptr.vmem [resolvable:$true] %s863
      %s865 = sshll.u32 %s11, 4
      %s866 = int_to_ptr.hbm [resolvable:$true] %s865
      %868 = dma.vmem_to_hbm [thread:$0]  %s864, 256, %s866, [#allocation5]
    $region85: #{tpu_custom_call.1} parent=1 // pred_fallthru
      _
    // Predicated region
    $region86: #{tpu_custom_call.1} parent=1 // pred_check
      _
    $region87: #{tpu_custom_call.1} parent=1 // pred_check_branch
      %870 = sbr.rel (0) target = $region89
    $region88: #{tpu_custom_call.1} parent=1 // pred_region
      %872 = dma.done [#allocation5], 256
    $region89: #{tpu_custom_call.1} parent=1 // pred_fallthru
      _
    %873 = vsyncpa [#allocation4], 1
    %874 = vsyncpa [#allocation7], 1
    %875 = vsyncpa [#allocation10], 1
    %876 = vsyncpa [#allocation13], 1
    %877 = vsyncpa [#allocation16], 1
    %878 = vsyncpa [#allocation5], 1

</llo_original>
